<compile_context>
chip_gen: v7x
topology: tpu7x:2x2x1
jax: 0.10.0
libtpu: 0.0.40
codegen_flags: <defaults>
</compile_context>

<pallas_src>
import jax
import jax.numpy as jnp
from jax.experimental import pallas as pl
from jax.experimental.pallas import tpu as pltpu


def _round_up(x, m):
    return (x + m - 1) // m * m


# ----------------------------------------------------------------------------
# Pallas kernel
# ----------------------------------------------------------------------------
def gcn_classifier_kernel(a_ref, xt_ref, wc_ref, bc_ref, wl_ref, bl_ref,
                          out_ref, acc_ref):
    """Grid = (j: destination-node tiles, k: contraction over source nodes).

    a_ref  : (TILE_K, TILE_N) bf16  tile of Â^T  (source rows x dest cols)
    xt_ref : (F, TILE_K)      bf16  tile of X^T  (features x source nodes)
    wc_ref : (F, F)           bf16  GCNConv weight Wc (out_f, in_f), resident
    bc_ref : (F, 1)           f32   GCNConv bias (column), resident
    wl_ref : (F, 1)           f32   Linear weight Wl^T (column), resident
    bl_ref : (1,)             f32   Linear bias (SMEM scalar)
    out_ref: (1, TILE_N)      f32   sigmoid output, lane-dense
    acc_ref: (F, TILE_N)      f32   VMEM accumulator for the Â aggregation
    """
    k = pl.program_id(1)

    @pl.when(k == 0)
    def _():
        acc_ref[...] = jnp.zeros_like(acc_ref)

    # Z_k = Wc @ X^T[:, k-tile]  -> (F, TILE_K), f32 accumulation on the MXU.
    z_k = jnp.dot(wc_ref[...], xt_ref[...], preferred_element_type=jnp.float32)

    # acc += Z_k @ Â^T[k-tile, j-tile]   == (Â (X Wc^T))^T for this tile.
    acc_ref[...] += jnp.dot(z_k.astype(jnp.bfloat16), a_ref[...],
                            preferred_element_type=jnp.float32)

    @pl.when(k == pl.num_programs(1) - 1)
    def _():
        h = jnp.maximum(acc_ref[...] + bc_ref[...], 0.0)          # (F, TILE_N)
        # Linear(F -> 1): VPU multiply + XLU sublane reduction; keeps the MXU
        # out of a 1-lane-wide matmul.
        logits = jnp.sum(h * wl_ref[...], axis=0, keepdims=True) + bl_ref[0]
        # sigmoid = 1 / (1 + exp(-x)): exp and reciprocal both ride the EUP.
        out_ref[...] = pl.reciprocal(1.0 + jnp.exp(-logits), approx=True)


# ----------------------------------------------------------------------------
# Wrapper: padding / layout / bf16 casts + pallas_call with a tiled grid
# ----------------------------------------------------------------------------
def gcn_classifier_forward(a_hat, x, wc, bc, wl, bl):
    """a_hat: [N,N] normalized adjacency, x: [N,F], wc: [F,F] (out,in),
    bc: [F], wl: [1,F], bl: [1]  ->  out: [N,1] (same layout as the module)."""
    n, f = x.shape
    tile_n = 128                                   # lane tile of output nodes
    n_pad = _round_up(n, tile_n)
    # Contraction tile over source nodes: match the MXU depth (256 on
    # v6e/v7x) when N allows, else 128 (v5e MXU depth / minimum lane tile).
    tile_k = 256 if n_pad % 256 == 0 else 128

    # Host-side layout prep: transpose to feature-major, zero-pad the node
    # axis, cast MXU operands to bf16. The kernel consumes Â^T so the
    # aggregation is a plain (F, K) x (K, TILE_N) dot.
    xt = jnp.zeros((f, n_pad), jnp.bfloat16).at[:, :n].set(
        x.T.astype(jnp.bfloat16))
    a_t = jnp.zeros((n_pad, n_pad), jnp.bfloat16).at[:n, :n].set(
        a_hat.T.astype(jnp.bfloat16))
    wc_b = wc.astype(jnp.bfloat16)
    bc_col = bc.reshape(f, 1).astype(jnp.float32)
    wl_col = wl.reshape(f, 1).astype(jnp.float32)
    bl_s = bl.reshape(1).astype(jnp.float32)

    grid = (n_pad // tile_n, n_pad // tile_k)

    out = pl.pallas_call(
        gcn_classifier_kernel,
        out_shape=jax.ShapeDtypeStruct((1, n_pad), jnp.float32),
        grid=grid,
        in_specs=[
            pl.BlockSpec((tile_k, tile_n), lambda j, k: (k, j)),  # Â^T tiles
            pl.BlockSpec((f, tile_k), lambda j, k: (0, k)),       # X^T tiles
            pl.BlockSpec((f, f), lambda j, k: (0, 0)),            # Wc resident
            pl.BlockSpec((f, 1), lambda j, k: (0, 0)),            # bc resident
            pl.BlockSpec((f, 1), lambda j, k: (0, 0)),            # Wl^T resident
            pl.BlockSpec(memory_space=pltpu.MemorySpace.SMEM),    # bl scalar
        ],
        out_specs=pl.BlockSpec((1, tile_n), lambda j, k: (0, j)),
        scratch_shapes=[pltpu.VMEM((f, tile_n), jnp.float32)],
        compiler_params=pltpu.CompilerParams(
            # j (destination nodes) shards across v7x's two TensorCores;
            # k is the accumulated reduction axis.
            dimension_semantics=("parallel", "arbitrary"),
            # Explicit limit, well under v7x's 64 MiB VMEM (tiles are <1 MiB).
            vmem_limit_bytes=32 * 1024 * 1024,
        ),
    )(a_t, xt, wc_b, bc_col, wl_col, bl_s)

    # Back to the PyTorch [N, 1] layout.
    return out[0, :n].reshape(n, 1)


# ----------------------------------------------------------------------------
# Plain-JAX glue: dense Â = D^{-1/2}(A + I)D^{-1/2} from edge_index [2, E]
# (matches torch_geometric GCNConv defaults: add_self_loops, normalize)
# ----------------------------------------------------------------------------
def normalized_adjacency(edge_index, num_nodes):
    src = edge_index[0]
    dst = edge_index[1]
    a = jnp.zeros((num_nodes, num_nodes), jnp.float32).at[dst, src].add(1.0)
    a = a + jnp.eye(num_nodes, dtype=jnp.float32)            # self loops
    deg = a.sum(axis=1)
    d_inv_sqrt = jnp.where(deg > 0.0, 1.0 / jnp.sqrt(deg), 0.0)
    return d_inv_sqrt[:, None] * a * d_inv_sqrt[None, :]


if __name__ == "__main__":
    num_nodes = 16       # N "patients"
    num_features = 32    # F

    key = jax.random.PRNGKey(0)
    k_x, k_e, k_wc, k_bc, k_wl, k_bl = jax.random.split(key, 6)

    # Node features
    x = jax.random.normal(k_x, (num_nodes, num_features), dtype=jnp.float32)

    # Deterministic random graph: 48 directed edges
    num_edges = 48
    edge_index = jax.random.randint(k_e, (2, num_edges), 0, num_nodes,
                                    dtype=jnp.int32)

    # Parameters (shapes implied by the module __init__)
    # GCNConv(in=F, out=F): weight Wc [F, F] (out, in), bias bc [F]
    wc = jax.random.normal(k_wc, (num_features, num_features), jnp.float32) * 0.1
    bc = jax.random.normal(k_bc, (num_features,), jnp.float32) * 0.1
    # Linear(F, 1): weight Wl [1, F], bias bl [1]
    wl = jax.random.normal(k_wl, (1, num_features), jnp.float32) * 0.1
    bl = jax.random.normal(k_bl, (1,), jnp.float32) * 0.1

    a_hat = normalized_adjacency(edge_index, num_nodes)

    out = gcn_classifier_forward(a_hat, x, wc, bc, wl, bl)
    out = jax.block_until_ready(out)

    # Reference (f32) in plain JAX; bf16 MXU inputs -> loosened tolerance.
    ref = jax.nn.sigmoid(
        jnp.maximum(a_hat @ (x @ wc.T) + bc[None, :], 0.0) @ wl.T + bl[None, :]
    )
    assert out.shape == (num_nodes, 1)
    assert jnp.allclose(out, ref, atol=2e-2), "mismatch vs reference"

    print("KERNEL_OK")
</pallas_src>

<mosaic_0001>
module attributes {stable_mosaic.version = 11 : i64} {
  func.func @gcn_classifier_kernel(%arg0: i32, %arg1: i32, %arg2: memref<128x128xbf16, #tpu.memory_space<vmem>>, %arg3: memref<32x128xbf16, #tpu.memory_space<vmem>>, %arg4: memref<32x32xbf16, #tpu.memory_space<vmem>>, %arg5: memref<32x1xf32, #tpu.memory_space<vmem>>, %arg6: memref<32x1xf32, #tpu.memory_space<vmem>>, %arg7: memref<1xf32, #tpu.memory_space<smem>>, %arg8: memref<1x128xf32, #tpu.memory_space<vmem>>, %arg9: memref<32x128xf32, #tpu.memory_space<vmem>>) attributes {dimension_semantics = [#tpu.dimension_semantics<parallel>, #tpu.dimension_semantics<arbitrary>], iteration_bounds = array<i64: 1, 1>, scalar_prefetch = 0 : i64, scratch_operands = 1 : i64, tpu.core_type = #tpu.core_type<tc>, window_params = [{transform_indices = @transform_0, window_bounds = array<i64: 128, 128>}, {transform_indices = @transform_1, window_bounds = array<i64: 32, 128>}, {pipeline_mode = #tpu.pipeline_mode<synchronous>, transform_indices = @transform_2, window_bounds = array<i64: 32, 32>}, {pipeline_mode = #tpu.pipeline_mode<synchronous>, transform_indices = @transform_3, window_bounds = array<i64: 32, 1>}, {pipeline_mode = #tpu.pipeline_mode<synchronous>, transform_indices = @transform_4, window_bounds = array<i64: 32, 1>}, {transform_indices = @transform_5, window_bounds = array<i64: 1>}, {transform_indices = @transform_6, window_bounds = array<i64: 1, 128>}]} {
    %c0_i32 = arith.constant 0 : i32
    %0 = arith.cmpi eq, %arg1, %c0_i32 : i32
    %1 = arith.extui %0 : i1 to i32
    %c0_i32_0 = arith.constant 0 : i32
    %2 = arith.cmpi ne, %1, %c0_i32_0 : i32
    scf.if %2 {
      %cst_13 = arith.constant 0.000000e+00 : f32
      %15 = vector.broadcast %cst_13 : f32 to vector<32x128xf32>
      %c0_14 = arith.constant 0 : index
      %c0_15 = arith.constant 0 : index
      %16 = vector.load %arg9[%c0_14, %c0_15] : memref<32x128xf32, #tpu.memory_space<vmem>>, vector<32x128xf32>
      tpu.vector_store %arg9[%c0_14, %c0_15], %15 {strides = array<i32>} : memref<32x128xf32, #tpu.memory_space<vmem>>, vector<32x128xf32>,
    } else {
    }
    %c0 = arith.constant 0 : index
    %c0_1 = arith.constant 0 : index
    %3 = vector.load %arg4[%c0, %c0_1] : memref<32x32xbf16, #tpu.memory_space<vmem>>, vector<32x32xbf16>
    %c0_2 = arith.constant 0 : index
    %c0_3 = arith.constant 0 : index
    %4 = vector.load %arg3[%c0_2, %c0_3] : memref<32x128xbf16, #tpu.memory_space<vmem>>, vector<32x128xbf16>
    %cst = arith.constant dense<0.000000e+00> : vector<32x128xf32>
    %5 = tpu.matmul %3, %4, %cst {dimension_numbers = #tpu.dot_dimension_numbers<[1], [0], [0], [1], [0, 0, 1, 1], [], []>} : vector<32x32xbf16>, vector<32x128xbf16>, vector<32x128xf32> -> vector<32x128xf32>
    %c0_4 = arith.constant 0 : index
    %c0_5 = arith.constant 0 : index
    %6 = vector.load %arg9[%c0_4, %c0_5] : memref<32x128xf32, #tpu.memory_space<vmem>>, vector<32x128xf32>
    %7 = arith.truncf %5 : vector<32x128xf32> to vector<32x128xbf16>
    %c0_6 = arith.constant 0 : index
    %c0_7 = arith.constant 0 : index
    %8 = vector.load %arg2[%c0_6, %c0_7] : memref<128x128xbf16, #tpu.memory_space<vmem>>, vector<128x128xbf16>
    %cst_8 = arith.constant dense<0.000000e+00> : vector<32x128xf32>
    %9 = tpu.matmul %7, %8, %cst_8 {dimension_numbers = #tpu.dot_dimension_numbers<[1], [0], [0], [1], [0, 0, 1, 1], [], []>} : vector<32x128xbf16>, vector<128x128xbf16>, vector<32x128xf32> -> vector<32x128xf32>
    %10 = arith.addf %6, %9 : vector<32x128xf32>
    %c0_9 = arith.constant 0 : index
    %c0_10 = arith.constant 0 : index
    %11 = vector.load %arg9[%c0_9, %c0_10] : memref<32x128xf32, #tpu.memory_space<vmem>>, vector<32x128xf32>
    tpu.vector_store %arg9[%c0_9, %c0_10], %10 {strides = array<i32>} : memref<32x128xf32, #tpu.memory_space<vmem>>, vector<32x128xf32>,
    %c0_i32_11 = arith.constant 0 : i32
    %12 = arith.cmpi eq, %arg1, %c0_i32_11 : i32
    %13 = arith.extui %12 : i1 to i32
    %c0_i32_12 = arith.constant 0 : i32
    %14 = arith.cmpi ne, %13, %c0_i32_12 : i32
    scf.if %14 {
      %c0_13 = arith.constant 0 : index
      %c0_14 = arith.constant 0 : index
      %15 = vector.load %arg9[%c0_13, %c0_14] : memref<32x128xf32, #tpu.memory_space<vmem>>, vector<32x128xf32>
      %c0_15 = arith.constant 0 : index
      %c0_16 = arith.constant 0 : index
      %16 = vector.load %arg5[%c0_15, %c0_16] : memref<32x1xf32, #tpu.memory_space<vmem>>, vector<32x1xf32>
      %17 = vector.broadcast %16 : vector<32x1xf32> to vector<32x128xf32>
      %18 = arith.addf %15, %17 : vector<32x128xf32>
      %cst_17 = arith.constant 0.000000e+00 : f32
      %19 = vector.broadcast %cst_17 : f32 to vector<32x128xf32>
      %20 = arith.maximumf %18, %19 : vector<32x128xf32>
      %c0_18 = arith.constant 0 : index
      %c0_19 = arith.constant 0 : index
      %21 = vector.load %arg6[%c0_18, %c0_19] : memref<32x1xf32, #tpu.memory_space<vmem>>, vector<32x1xf32>
      %22 = vector.broadcast %21 : vector<32x1xf32> to vector<32x128xf32>
      %23 = arith.mulf %20, %22 : vector<32x128xf32>
      %cst_20 = arith.constant dense<0.000000e+00> : vector<128xf32>
      %24 = vector.multi_reduction <add>, %23, %cst_20 [0] : vector<32x128xf32> to vector<128xf32>
      %25 = vector.shape_cast %24 : vector<128xf32> to vector<1x128xf32>
      %c0_21 = arith.constant 0 : index
      %26 = memref.load %arg7[%c0_21] : memref<1xf32, #tpu.memory_space<smem>>
      %27 = vector.broadcast %26 : f32 to vector<1x128xf32>
      %28 = arith.addf %25, %27 : vector<1x128xf32>
      %cst_22 = arith.constant 0.000000e+00 : f32
      %29 = vector.broadcast %cst_22 : f32 to vector<1x128xf32>
      %30 = arith.subf %29, %28 : vector<1x128xf32>
      %31 = math.exp %30 : vector<1x128xf32>
      %cst_23 = arith.constant 1.000000e+00 : f32
      %32 = vector.broadcast %cst_23 : f32 to vector<1x128xf32>
      %33 = arith.addf %32, %31 : vector<1x128xf32>
      %34 = tpu.reciprocal %33 {approx = true} : vector<1x128xf32> -> vector<1x128xf32>
      %c0_24 = arith.constant 0 : index
      %c0_25 = arith.constant 0 : index
      %35 = vector.load %arg8[%c0_24, %c0_25] : memref<1x128xf32, #tpu.memory_space<vmem>>, vector<1x128xf32>
      tpu.vector_store %arg8[%c0_24, %c0_25], %34 {strides = array<i32>} : memref<1x128xf32, #tpu.memory_space<vmem>>, vector<1x128xf32>,
    } else {
    }
    return
  }
  func.func @transform_0(%arg0: i32, %arg1: i32) -> (i32, i32) {
    %c0_i32 = arith.constant 0 : i32
    return %arg1, %arg0 : i32, i32
  }
  func.func @transform_1(%arg0: i32, %arg1: i32) -> (i32, i32) {
    %c0_i32 = arith.constant 0 : i32
    %c0_i32_0 = arith.constant 0 : i32
    return %c0_i32, %arg1 : i32, i32
  }
  func.func @transform_2(%arg0: i32, %arg1: i32) -> (i32, i32) {
    %c0_i32 = arith.constant 0 : i32
    %c0_i32_0 = arith.constant 0 : i32
    %c0_i32_1 = arith.constant 0 : i32
    return %c0_i32, %c0_i32_0 : i32, i32
  }
  func.func @transform_3(%arg0: i32, %arg1: i32) -> (i32, i32) {
    %c0_i32 = arith.constant 0 : i32
    %c0_i32_0 = arith.constant 0 : i32
    %c0_i32_1 = arith.constant 0 : i32
    return %c0_i32, %c0_i32_0 : i32, i32
  }
  func.func @transform_4(%arg0: i32, %arg1: i32) -> (i32, i32) {
    %c0_i32 = arith.constant 0 : i32
    %c0_i32_0 = arith.constant 0 : i32
    %c0_i32_1 = arith.constant 0 : i32
    return %c0_i32, %c0_i32_0 : i32, i32
  }
  func.func @transform_5(%arg0: i32, %arg1: i32) -> i32 {
    %c0_i32 = arith.constant 0 : i32
    %c0_i32_0 = arith.constant 0 : i32
    return %c0_i32 : i32
  }
  func.func @transform_6(%arg0: i32, %arg1: i32) -> (i32, i32) {
    %c0_i32 = arith.constant 0 : i32
    %c0_i32_0 = arith.constant 0 : i32
    return %c0_i32, %arg0 : i32, i32
  }
}

</mosaic_0001>

<llo_original>
// kernel: tpu_custom_call.1
$region0: #{tpu_custom_call.1}
  #allocation0 [shape = 'u32[]', space=smem, size = 0x4, offset = 0x4, fixed_abs, tag = 'smem constant byte address 0x4 - core index']
  #allocation1 [shape = 'u32[144,128]{1,0:T(1,128)}', space=vmem, size = 0x12000, scoped, tag = 'internal scratch']
  #allocation2 [shape = 'f32[32,128]{1,0:T(8,128)}', space=vmem, size = 0x4000, scoped, tag = 'scratch operand']
  #allocation3 [shape = 'f32[1]{0:T(128)S(6)}', space=smem, size = 0x200, scoped, tag = 'scoped memory for tpu_custom_call.1']
  %s0 = inlined_call_operand.vmem [shape: bf16[128,128], index: 0, kind: input, shape index: {}]
  %s1 = inlined_call_operand.hbm [shape: bf16[32,128], index: 1, kind: input, shape index: {}]
  %s2 = inlined_call_operand.hbm [shape: bf16[32,32], index: 2, kind: input, shape index: {}]
  %s3 = inlined_call_operand.vmem [shape: f32[32,1], index: 3, kind: input, shape index: {}]
  %s4 = inlined_call_operand.vmem [shape: f32[32,1], index: 4, kind: input, shape index: {}]
  %s5 = inlined_call_operand.<no memory space> [shape: f32[1], index: 5, kind: input, shape index: {}]
  %s6 = inlined_call_operand.hbm [shape: f32[1,128], index: 6, kind: output, shape index: {}]
  %s7 = sld [smem:[#allocation0]]
  $region50: #{tpu_custom_call.1} parent=0
    _
  %s9 = ssub.s32 1, %s7
  %s10 = scalar_select 0, %s9, %s7
  %11 = sst [smem:[#allocation3]] %s5
  $region1: #{tpu_custom_call.1} parent=0
    #allocation4 [shape = 'u8[8192]{0}', space=vmem, size = 0x2000, scoped, tag = 'input window, operand 1, single buffered']
    #allocation5 [shape = 's32[1]{0}', space=sflag, size = 0x4, scoped, tag = 'scoped memory for tpu_custom_call.1']
    #allocation6 [shape = 's32[1]{0}', space=sflag, size = 0x4, scoped, tag = 'scoped memory for tpu_custom_call.1']
    #allocation7 [shape = 'u8[8192]{0}', space=vmem, size = 0x2000, scoped, tag = 'input window, operand 2, single buffered']
    #allocation8 [shape = 's32[1]{0}', space=sflag, size = 0x4, scoped, tag = 'scoped memory for tpu_custom_call.1']
    #allocation9 [shape = 'u8[512]{0}', space=vmem, size = 0x400, scoped, tag = 'output window, operand 0, single buffered']
    %12 = vsyncpa [#allocation5], 0
    %13 = vsyncpa [#allocation8], 0
    %14 = vsyncpa [#allocation6], 0
    // Predicated region
    $region2: #{tpu_custom_call.1} parent=1 // pred_check
      _
    $region3: #{tpu_custom_call.1} parent=1 // pred_check_branch
      %16 = sbr.rel (0) target = $region5
    $region4: #{tpu_custom_call.1} parent=1 // pred_region
      _
    $region5: #{tpu_custom_call.1} parent=1 // pred_fallthru
      _
    // Predicated region
    $region6: #{tpu_custom_call.1} parent=1 // pred_check
      _
    $region7: #{tpu_custom_call.1} parent=1 // pred_check_branch
      %18 = sbr.rel (0) target = $region9
    $region8: #{tpu_custom_call.1} parent=1 // pred_region
      %s20 = ssub.s32 256, 256
      %21 = vsyncadd [#allocation5], %s20
      %s22 = sshll.u32 [#allocation4], 4
      %s23 = int_to_ptr.vmem [resolvable:$true] %s22
      %28 = dma.hbm_to_vmem [thread:$0]  %s1, 256, %s23, [#allocation5], 64, 64, 4
    $region9: #{tpu_custom_call.1} parent=1 // pred_fallthru
      _
    // Predicated region
    $region10: #{tpu_custom_call.1} parent=1 // pred_check
      _
    $region11: #{tpu_custom_call.1} parent=1 // pred_check_branch
      %30 = sbr.rel (0) target = $region13
    $region12: #{tpu_custom_call.1} parent=1 // pred_region
      %s32 = ssub.s32 256, 256
      %33 = vsyncadd [#allocation8], %s32
      %s34 = sshll.u32 [#allocation7], 4
      %s35 = int_to_ptr.vmem [resolvable:$true] %s34
      %40 = dma.hbm_to_vmem [thread:$0]  %s2, 256, %s35, [#allocation8], 64, 64, 4
    $region13: #{tpu_custom_call.1} parent=1 // pred_fallthru
      _
    // Predicated region
    $region14: #{tpu_custom_call.1} parent=1 // pred_check
      _
    $region15: #{tpu_custom_call.1} parent=1 // pred_check_branch
      %42 = sbr.rel (0) target = $region17
    $region16: #{tpu_custom_call.1} parent=1 // pred_region
      _
    $region17: #{tpu_custom_call.1} parent=1 // pred_fallthru
      _
    // Predicated region
    $region18: #{tpu_custom_call.1} parent=1 // pred_check
      _
    $region19: #{tpu_custom_call.1} parent=1 // pred_check_branch
      %44 = sbr.rel (0) target = $region21
    $region20: #{tpu_custom_call.1} parent=1 // pred_region
      _
    $region21: #{tpu_custom_call.1} parent=1 // pred_fallthru
      _
    // Predicated region
    $region22: #{tpu_custom_call.1} parent=1 // pred_check
      _
    $region23: #{tpu_custom_call.1} parent=1 // pred_check_branch
      %46 = sbr.rel (0) target = $region25
    $region24: #{tpu_custom_call.1} parent=1 // pred_region
      _
    $region25: #{tpu_custom_call.1} parent=1 // pred_fallthru
      _
    // Predicated region
    $region26: #{tpu_custom_call.1} parent=1 // pred_check
      _
    $region27: #{tpu_custom_call.1} parent=1 // pred_check_branch
      %48 = sbr.rel (0) target = $region29
    $region28: #{tpu_custom_call.1} parent=1 // pred_region
      %49 = dma.done [#allocation5], 256
    $region29: #{tpu_custom_call.1} parent=1 // pred_fallthru
      _
    // Predicated region
    $region30: #{tpu_custom_call.1} parent=1 // pred_check
      _
    $region31: #{tpu_custom_call.1} parent=1 // pred_check_branch
      %51 = sbr.rel (0) target = $region33
    $region32: #{tpu_custom_call.1} parent=1 // pred_region
      %52 = dma.done [#allocation8], 256
    $region33: #{tpu_custom_call.1} parent=1 // pred_fallthru
      _
    %p54 = scmp.eq.s32.totalorder 0, 0
    // Predicated region
    $region34: #{tpu_custom_call.1} parent=1 // pred_check
      %p55 = pneg %p54
    $region35: #{tpu_custom_call.1} parent=1 // pred_check_branch
      %57 = sbr.rel (%p55) target = $region37
    $region36: #{tpu_custom_call.1} parent=1 // pred_region
      %58 = vst [vmem:[#allocation2] sm:$0xff] 0.0
      %59 = vst [vmem:[#allocation2 + $0x8] sm:$0xff] 0.0
      %60 = vst [vmem:[#allocation2 + $0x10] sm:$0xff] 0.0
      %61 = vst [vmem:[#allocation2 + $0x18] sm:$0xff] 0.0
    $region37: #{tpu_custom_call.1} parent=1 // pred_fallthru
      _
    %v62 = vld [vmem:[#allocation7] sm:$0xf]
    %v63 = vld [vmem:[#allocation7 + $0x4] sm:$0xf]
    %v64 = vld [vmem:[#allocation7 + $0x8] sm:$0xf]
    %v65 = vld [vmem:[#allocation7 + $0xc] sm:$0xf]
    %v66 = vld [vmem:[#allocation4] sm:$0xf]
    %v67 = vld [vmem:[#allocation4 + $0x4] sm:$0xf]
    %v68 = vld [vmem:[#allocation4 + $0x8] sm:$0xf]
    %v69 = vld [vmem:[#allocation4 + $0xc] sm:$0xf]
    %v74 = vunpack.c.l.b16 %v62
    %v75 = vunpack.c.l.b16 %v63
    %v76 = vunpack.c.l.b16 %v64
    %v77 = vunpack.c.l.b16 %v65
    %v78 = vpack.c.b16 %v75, %v74
    %v79 = vpack.c.b16 %v77, %v76
    %v84 = vunpack.c.l.b16 %v66
    %v85 = vunpack.c.l.b16 %v67
    %v86 = vunpack.c.l.b16 %v68
    %v87 = vunpack.c.l.b16 %v69
    %v88 = vpack.c.b16 %v85, %v84
    %v89 = vpack.c.b16 %v87, %v86
    %vm92 = vcmask 261120
    %v94 = vsel %vm92, %v78, 0
    %v97 = vsel %vm92, %v79, 0
    %99 = vmatprep.subr.bf16.mxu0 0
    %100 = vmatpush1.bf16.msra.mxu0 %v88
    %101 = vmatprep.subr.bf16.mxu0 0
    %102 = vmatpush1.bf16.msra.mxu0 %v89
    %103 = vmatprep.subr.bf16.mxu0 0
    %104 = vmatpush1.bf16.msra.mxu0 0
    %105 = vmatprep.subr.bf16.mxu0 0
    %106 = vmatpush1.bf16.msra.mxu0 0
    %107 = vmatprep.subr.bf16.mxu0 0
    %108 = vmatpush1.bf16.msra.mxu0 0
    %109 = vmatprep.subr.bf16.mxu0 0
    %110 = vmatpush1.bf16.msra.mxu0 0
    %111 = vmatprep.subr.bf16.mxu0 0
    %112 = vmatpush1.bf16.msra.mxu0 0
    %113 = vmatprep.subr.bf16.mxu0 0
    %114 = vmatpush1.bf16.msra.mxu0 0
    %115 = vmatprep.subr.bf16.mxu0 0
    %116 = vmatpush1.bf16.msra.mxu0 0
    %117 = vmatprep.subr.bf16.mxu0 0
    %118 = vmatpush1.bf16.msra.mxu0 0
    %119 = vmatprep.subr.bf16.mxu0 0
    %120 = vmatpush1.bf16.msra.mxu0 0
    %121 = vmatprep.subr.bf16.mxu0 0
    %122 = vmatpush1.bf16.msra.mxu0 0
    %123 = vmatprep.subr.bf16.mxu0 0
    %124 = vmatpush1.bf16.msra.mxu0 0
    %125 = vmatprep.subr.bf16.mxu0 0
    %126 = vmatpush1.bf16.msra.mxu0 0
    %127 = vmatprep.subr.bf16.mxu0 0
    %128 = vmatpush1.bf16.msra.mxu0 0
    %129 = vmatprep.subr.bf16.mxu0 0
    %130 = vmatpush1.bf16.msra.mxu0 0
    %131 = vmatprep.mubr.bf16.mxu0 0
    %132 = vmatmul.mubr.bf16.gmra.mrb[0].mxu0 %v94
    %v133 = vpop.f32.mrb[0].mxu0
    %v134 = vadd.f32 0.0, %v133
    %v135 = vpop.f32.mrb[0].mxu0
    %v136 = vpop.f32.mrb[0].mxu0
    %v137 = vadd.f32 0.0, %v136
    %v138 = vpop.f32.mrb[0].mxu0
    %139 = vmatprep.mubr.bf16.mxu0 0
    %140 = vmatmul.mubr.bf16.gmra.mrb[0].mxu0 %v97
    %v141 = vpop.f32.mrb[0].mxu0
    %v142 = vadd.f32 0.0, %v141
    %v143 = vpop.f32.mrb[0].mxu0
    %v144 = vpop.f32.mrb[0].mxu0
    %v145 = vadd.f32 0.0, %v144
    %v146 = vpop.f32.mrb[0].mxu0
    %147 = vdwg.mxu0
    %v148 = vld [vmem:[#allocation2] sm:$0xff]
    %v149 = vld [vmem:[#allocation2 + $0x8] sm:$0xff]
    %v150 = vld [vmem:[#allocation2 + $0x10] sm:$0xff]
    %v151 = vld [vmem:[#allocation2 + $0x18] sm:$0xff]
    %v152 = vpack.c.bf16 %v137, %v134
    %v153 = vpack.c.bf16 %v145, %v142
    %v154 = vld [vmem:[%s0] sm:$0xf]
    %v155 = vld [vmem:[%s0 + $0x4] sm:$0xf]
    %v156 = vld [vmem:[%s0 + $0x8] sm:$0xf]
    %v157 = vld [vmem:[%s0 + $0xc] sm:$0xf]
    %v158 = vld [vmem:[%s0 + $0x10] sm:$0xf]
    %v159 = vld [vmem:[%s0 + $0x14] sm:$0xf]
    %v160 = vld [vmem:[%s0 + $0x18] sm:$0xf]
    %v161 = vld [vmem:[%s0 + $0x1c] sm:$0xf]
    %v162 = vld [vmem:[%s0 + $0x20] sm:$0xf]
    %v163 = vld [vmem:[%s0 + $0x24] sm:$0xf]
    %v164 = vld [vmem:[%s0 + $0x28] sm:$0xf]
    %v165 = vld [vmem:[%s0 + $0x2c] sm:$0xf]
    %v166 = vld [vmem:[%s0 + $0x30] sm:$0xf]
    %v167 = vld [vmem:[%s0 + $0x34] sm:$0xf]
    %v168 = vld [vmem:[%s0 + $0x38] sm:$0xf]
    %v169 = vld [vmem:[%s0 + $0x3c] sm:$0xf]
    %v186 = vunpack.c.l.b16 %v154
    %v187 = vunpack.c.l.b16 %v155
    %v188 = vunpack.c.l.b16 %v156
    %v189 = vunpack.c.l.b16 %v157
    %v190 = vunpack.c.l.b16 %v158
    %v191 = vunpack.c.l.b16 %v159
    %v192 = vunpack.c.l.b16 %v160
    %v193 = vunpack.c.l.b16 %v161
    %v194 = vunpack.c.l.b16 %v162
    %v195 = vunpack.c.l.b16 %v163
    %v196 = vunpack.c.l.b16 %v164
    %v197 = vunpack.c.l.b16 %v165
    %v198 = vunpack.c.l.b16 %v166
    %v199 = vunpack.c.l.b16 %v167
    %v200 = vunpack.c.l.b16 %v168
    %v201 = vunpack.c.l.b16 %v169
    %v202 = vpack.c.b16 %v187, %v186
    %v203 = vpack.c.b16 %v189, %v188
    %v204 = vpack.c.b16 %v191, %v190
    %v205 = vpack.c.b16 %v193, %v192
    %v206 = vpack.c.b16 %v195, %v194
    %v207 = vpack.c.b16 %v197, %v196
    %v208 = vpack.c.b16 %v199, %v198
    %v209 = vpack.c.b16 %v201, %v200
    %218 = vmatprep.subr.bf16.mxu0 0
    %219 = vmatpush1.bf16.msra.mxu0 %v202
    %220 = vmatprep.subr.bf16.mxu0 0
    %221 = vmatpush1.bf16.msra.mxu0 %v203
    %222 = vmatprep.subr.bf16.mxu0 0
    %223 = vmatpush1.bf16.msra.mxu0 %v204
    %224 = vmatprep.subr.bf16.mxu0 0
    %225 = vmatpush1.bf16.msra.mxu0 %v205
    %226 = vmatprep.subr.bf16.mxu0 0
    %227 = vmatpush1.bf16.msra.mxu0 %v206
    %228 = vmatprep.subr.bf16.mxu0 0
    %229 = vmatpush1.bf16.msra.mxu0 %v207
    %230 = vmatprep.subr.bf16.mxu0 0
    %231 = vmatpush1.bf16.msra.mxu0 %v208
    %232 = vmatprep.subr.bf16.mxu0 0
    %233 = vmatpush1.bf16.msra.mxu0 %v209
    %234 = vmatprep.subr.bf16.mxu0 0
    %235 = vmatpush1.bf16.msra.mxu0 0
    %236 = vmatprep.subr.bf16.mxu0 0
    %237 = vmatpush1.bf16.msra.mxu0 0
    %238 = vmatprep.subr.bf16.mxu0 0
    %239 = vmatpush1.bf16.msra.mxu0 0
    %240 = vmatprep.subr.bf16.mxu0 0
    %241 = vmatpush1.bf16.msra.mxu0 0
    %242 = vmatprep.subr.bf16.mxu0 0
    %243 = vmatpush1.bf16.msra.mxu0 0
    %244 = vmatprep.subr.bf16.mxu0 0
    %245 = vmatpush1.bf16.msra.mxu0 0
    %246 = vmatprep.subr.bf16.mxu0 0
    %247 = vmatpush1.bf16.msra.mxu0 0
    %248 = vmatprep.subr.bf16.mxu0 0
    %249 = vmatpush1.bf16.msra.mxu0 0
    %250 = vmatprep.mubr.bf16.mxu0 0
    %251 = vmatmul.mubr.bf16.gmra.mrb[0].mxu0 %v152
    %v252 = vpop.f32.mrb[0].mxu0
    %v253 = vadd.f32 0.0, %v252
    %v254 = vpop.f32.mrb[0].mxu0
    %v255 = vpop.f32.mrb[0].mxu0
    %v256 = vadd.f32 0.0, %v255
    %v257 = vpop.f32.mrb[0].mxu0
    %258 = vmatprep.mubr.bf16.mxu0 0
    %259 = vmatmul.mubr.bf16.gmra.mrb[0].mxu0 %v153
    %v260 = vpop.f32.mrb[0].mxu0
    %v261 = vadd.f32 0.0, %v260
    %v262 = vpop.f32.mrb[0].mxu0
    %v263 = vpop.f32.mrb[0].mxu0
    %v264 = vadd.f32 0.0, %v263
    %v265 = vpop.f32.mrb[0].mxu0
    %266 = vdwg.mxu0
    %v267 = vadd.f32 %v148, %v253
    %v268 = vadd.f32 %v149, %v256
    %v269 = vadd.f32 %v150, %v261
    %v270 = vadd.f32 %v151, %v264
    %271 = vst [vmem:[#allocation2] sm:$0xff] %v267
    %272 = vst [vmem:[#allocation2 + $0x8] sm:$0xff] %v268
    %273 = vst [vmem:[#allocation2 + $0x10] sm:$0xff] %v269
    %274 = vst [vmem:[#allocation2 + $0x18] sm:$0xff] %v270
    // Predicated region
    $region38: #{tpu_custom_call.1} parent=1 // pred_check
      %p275 = pneg %p54
    $region39: #{tpu_custom_call.1} parent=1 // pred_check_branch
      %277 = sbr.rel (%p275) target = $region41
    $region40: #{tpu_custom_call.1} parent=1 // pred_region
      %v278 = vld [vmem:[#allocation2] sm:$0xff]
      %v279 = vld [vmem:[#allocation2 + $0x8] sm:$0xff]
      %v280 = vld [vmem:[#allocation2 + $0x10] sm:$0xff]
      %v281 = vld [vmem:[#allocation2 + $0x18] sm:$0xff]
      %v282 = vld [vmem:[%s3] sm:$0xff]
      %v283 = vld [vmem:[%s3 + $0x8] sm:$0xff]
      %v284 = vld [vmem:[%s3 + $0x10] sm:$0xff]
      %v285 = vld [vmem:[%s3 + $0x18] sm:$0xff]
      %287 = vset.pattern.permute.xlu0 0
      %288 = vperm.xlu0 %287, %v282
      %v289 = vpop.permute.xlu0 %288
      %292 = vset.pattern.permute.xlu0 0
      %293 = vperm.xlu0 %292, %v283
      %v294 = vpop.permute.xlu0 %293
      %297 = vset.pattern.permute.xlu0 0
      %298 = vperm.xlu0 %297, %v284
      %v299 = vpop.permute.xlu0 %298
      %302 = vset.pattern.permute.xlu0 0
      %303 = vperm.xlu0 %302, %v285
      %v304 = vpop.permute.xlu0 %303
      %v306 = vadd.f32 %v278, %v289
      %v307 = vadd.f32 %v279, %v294
      %v308 = vadd.f32 %v280, %v299
      %v309 = vadd.f32 %v281, %v304
      %v310 = vmax.f32 %v306, 0.0
      %v311 = vmax.f32 %v307, 0.0
      %v312 = vmax.f32 %v308, 0.0
      %v313 = vmax.f32 %v309, 0.0
      %v314 = vld [vmem:[%s4] sm:$0xff]
      %v315 = vld [vmem:[%s4 + $0x8] sm:$0xff]
      %v316 = vld [vmem:[%s4 + $0x10] sm:$0xff]
      %v317 = vld [vmem:[%s4 + $0x18] sm:$0xff]
      %319 = vset.pattern.permute.xlu0 0
      %320 = vperm.xlu0 %319, %v314
      %v321 = vpop.permute.xlu0 %320
      %324 = vset.pattern.permute.xlu0 0
      %325 = vperm.xlu0 %324, %v315
      %v326 = vpop.permute.xlu0 %325
      %329 = vset.pattern.permute.xlu0 0
      %330 = vperm.xlu0 %329, %v316
      %v331 = vpop.permute.xlu0 %330
      %334 = vset.pattern.permute.xlu0 0
      %335 = vperm.xlu0 %334, %v317
      %v336 = vpop.permute.xlu0 %335
      %v338 = vmul.f32 %v310, %v321
      %v339 = vmul.f32 %v311, %v326
      %v340 = vmul.f32 %v312, %v331
      %v341 = vmul.f32 %v313, %v336
      %v342 = vadd.f32 %v338, %v339
      %v343 = vadd.f32 %v342, %v340
      %v344 = vadd.f32 %v343, %v341
      %v345 = vrot.slane %v344, 4
      %v346 = vadd.f32 %v344, %v345
      %v347 = vrot.slane %v346, 2
      %v348 = vadd.f32 %v346, %v347
      %v349 = vrot.slane %v348, 1
      %v350 = vadd.f32 %v348, %v349
      %s351 = sld [smem:[#allocation3]]
      %v352 = vstv %s351
      %v353 = vadd.f32 %v350, %v352
      %v354 = vsub.f32 0.0, %v353
      %v355 = vmul.f32 %v354, 1.442695
      %v356 = vpow.pop %v355
      %v357 = vadd.f32 %v356, 1.0
      %v358 = vrcp.pop %v357
      %359 = vst [vmem:[#allocation9] sm:$0x1] %v358
    $region41: #{tpu_custom_call.1} parent=1 // pred_fallthru
      _
    // Predicated region
    $region42: #{tpu_custom_call.1} parent=1 // pred_check
      _
    $region43: #{tpu_custom_call.1} parent=1 // pred_check_branch
      %361 = sbr.rel (0) target = $region45
    $region44: #{tpu_custom_call.1} parent=1 // pred_region
      %s363 = ssub.s32 16, 16
      %364 = vsyncadd [#allocation6], %s363
      %s366 = sshll.u32 [#allocation9], 4
      %s367 = int_to_ptr.vmem [resolvable:$true] %s366
      %369 = dma.vmem_to_hbm [thread:$0]  %s367, 16, %s6, [#allocation6]
    $region45: #{tpu_custom_call.1} parent=1 // pred_fallthru
      _
    // Predicated region
    $region46: #{tpu_custom_call.1} parent=1 // pred_check
      _
    $region47: #{tpu_custom_call.1} parent=1 // pred_check_branch
      %371 = sbr.rel (0) target = $region49
    $region48: #{tpu_custom_call.1} parent=1 // pred_region
      %372 = dma.done [#allocation6], 16
    $region49: #{tpu_custom_call.1} parent=1 // pred_fallthru
      _
    %373 = vsyncpa [#allocation5], 1
    %374 = vsyncpa [#allocation8], 1
    %375 = vsyncpa [#allocation6], 1

</llo_original>
